<compile_context>
chip_gen: v7x
topology: tpu7x:2x2x1
jax: 0.10.0
libtpu: 0.0.40
codegen_flags: <defaults>
</compile_context>

<pallas_src>
import functools

import jax
import jax.numpy as jnp
from jax.experimental import pallas as pl
from jax.experimental.pallas import tpu as pltpu


# ----------------------------- Pallas kernel ------------------------------- #
def _lung_seg_kernel(x_ref, w_ref, upt_ref, b_ref, o_ref, y_acc):
    """One (batch, channel-chunk) grid step.

    x_ref  : (1, c_block, Hin*Win)   channel chunk of one batch element
    w_ref  : (K, c_block)            1x1-conv weight chunk
    upt_ref: (Hin*Win, Hout*Wout)    kron(My, Mx)^T bilinear upsample matrix
    b_ref  : (K, 1)                  conv bias column (VMEM)
    o_ref  : (1, K, Hout*Wout)       binary mask output (f32 {0,1}), lane-dense
    y_acc  : (K, Hin*Win) f32        VMEM accumulator for the channel reduction
    """
    c = pl.program_id(1)

    @pl.when(c == 0)
    def _init():
        y_acc[...] = jnp.zeros_like(y_acc)

    # 1x1 conv = channel contraction, accumulated over channel chunks (MXU).
    y_acc[...] += jnp.dot(w_ref[...], x_ref[0],
                          preferred_element_type=jnp.float32)

    @pl.when(c == pl.num_programs(1) - 1)
    def _finalize():
        # Bilinear upsample (align_corners=True), applied AFTER the conv (the
        # two ops are linear and commute).  One matmul, everything lane-dense.
        up = jnp.dot(y_acc[...], upt_ref[...],
                     preferred_element_type=jnp.float32)      # (K, Hout*Wout)
        # sigmoid(up + b) > 0.5  <=>  up > -b   (exact; sigmoid(0) == 0.5)
        o_ref[0] = (up > -b_ref[...]).astype(jnp.float32)


# --------------------------- wrapper / glue -------------------------------- #
def _bilinear_matrix_align_corners(out_size: int, in_size: int) -> jnp.ndarray:
    """1-D bilinear interpolation matrix (out_size, in_size), align_corners=True."""
    o = jnp.arange(out_size, dtype=jnp.float32)
    if out_size > 1:
        src = o * (in_size - 1) / (out_size - 1)
    else:
        src = jnp.zeros((out_size,), jnp.float32)
    lo = jnp.clip(jnp.floor(src).astype(jnp.int32), 0, in_size - 1)
    hi = jnp.clip(lo + 1, 0, in_size - 1)
    frac = src - lo.astype(jnp.float32)
    rows = jnp.arange(out_size)
    M = jnp.zeros((out_size, in_size), jnp.float32)
    M = M.at[rows, lo].add(1.0 - frac)
    M = M.at[rows, hi].add(frac)
    return M


@functools.partial(jax.jit, static_argnames=("out_h", "out_w", "c_block"))
def lung_segmentation_forward(x, conv_w, conv_b, *, out_h, out_w, c_block=None):
    """x: (N, C, Hin, Win); conv_w: (K, C); conv_b: (K,).

    Returns the binary mask (N, K, out_h, out_w) as float32 {0, 1}.
    x may be f32 or bf16 (bf16 halves HBM traffic; accumulation stays f32).
    """
    N, C, Hin, Win = x.shape
    K = conv_w.shape[0]
    HW = Hin * Win
    OHW = out_h * out_w

    if c_block is None:
        c_block = C                       # one reduction step (grid = (N, 1))
    if C % c_block != 0:
        raise ValueError(f"c_block={c_block} must divide C={C}")
    n_c = C // c_block

    # Separable align_corners=True bilinear matrices, combined into one small
    # (Hin*Win, out_h*out_w) operator so the epilogue is a single matmul.
    My = _bilinear_matrix_align_corners(out_h, Hin)            # (out_h, Hin)
    Mx = _bilinear_matrix_align_corners(out_w, Win)            # (out_w, Win)
    up_t = jnp.kron(My, Mx).T                                  # (HW, OHW)

    x_flat = x.reshape(N, C, HW)                               # free reshape
    w = conv_w.astype(jnp.float32)                             # (K, C)
    b_col = conv_b.astype(jnp.float32).reshape(K, 1)           # (K, 1)

    out_flat = pl.pallas_call(
        _lung_seg_kernel,
        out_shape=jax.ShapeDtypeStruct((N, K, OHW), jnp.float32),
        grid_spec=pltpu.PrefetchScalarGridSpec(
            num_scalar_prefetch=0,
            grid=(N, n_c),
            in_specs=[
                pl.BlockSpec((1, c_block, HW), lambda n, c: (n, c, 0)),
                pl.BlockSpec((K, c_block), lambda n, c: (0, c)),
                pl.BlockSpec((HW, OHW), lambda n, c: (0, 0)),
                pl.BlockSpec((K, 1), lambda n, c: (0, 0)),
            ],
            out_specs=pl.BlockSpec((1, K, OHW), lambda n, c: (n, 0, 0)),
            scratch_shapes=[pltpu.VMEM((K, HW), jnp.float32)],
        ),
        compiler_params=pltpu.CompilerParams(
            dimension_semantics=("parallel", "arbitrary"),
        ),
    )(x_flat, w, up_t, b_col)

    return out_flat.reshape(N, K, out_h, out_w)


# --------------------------------- main ------------------------------------ #
if __name__ == "__main__":
    # Module config: upsample target (input_height, input_width); the conv is
    # hard-wired to 2048 input channels; num_classes defaults to 1.
    input_height, input_width = 16, 16
    in_channels = 2048
    num_classes = 1
    batch = 2
    hin, win = 8, 8              # small feature map, upsampled to 16x16

    key = jax.random.PRNGKey(0)
    kx, kw, kb = jax.random.split(key, 3)
    x = jax.random.normal(kx, (batch, in_channels, hin, win), dtype=jnp.float32)
    conv_w = jax.random.normal(kw, (num_classes, in_channels), dtype=jnp.float32) * 0.02
    conv_b = jax.random.normal(kb, (num_classes,), dtype=jnp.float32) * 0.02

    out = lung_segmentation_forward(
        x, conv_w, conv_b, out_h=input_height, out_w=input_width
    )
    out = jax.block_until_ready(out)
    assert out.shape == (batch, num_classes, input_height, input_width)

    # Pure-JAX f32 reference with the module's op order (upsample -> conv ->
    # sigmoid -> threshold), highest matmul precision.
    My = _bilinear_matrix_align_corners(input_height, hin)     # (out_h, Hin)
    Mx = _bilinear_matrix_align_corners(input_width, win)      # (out_w, Win)
    hp = jax.lax.Precision.HIGHEST
    up_ref = jnp.einsum("oh,nchw,pw->ncop", My, x, Mx, precision=hp)
    logits = (jnp.einsum("kc,ncop->nkop", conv_w, up_ref, precision=hp)
              + conv_b[None, :, None, None])
    ref_mask = (logits > 0.0).astype(jnp.float32)  # sigmoid(z) > 0.5 <=> z > 0

    # Conv-first vs upsample-first only changes rounding; binary masks can only
    # legitimately disagree where the logit is within matmul-rounding distance
    # of 0, so require exact agreement on every numerically decided pixel.
    decided = jnp.abs(logits) > 2e-2
    assert float(jnp.mean(decided)) > 0.9
    assert bool(jnp.all(jnp.logical_or(~decided, out == ref_mask)))
    print("KERNEL_OK")
</pallas_src>

<mosaic_0001>
module attributes {stable_mosaic.version = 11 : i64} {
  func.func private @main(%arg0: i32) attributes {dimension_semantics = [#tpu.dimension_semantics<core_parallel>], iteration_bounds = array<i64: 2>, tpu.core_type = #tpu.core_type<sc_scalar_subcore>, window_params = []} {
    return
  }
}

module attributes {stable_mosaic.version = 11 : i64} {
  func.func private @main(%arg0: i32) attributes {dimension_semantics = [#tpu.dimension_semantics<core_parallel>], iteration_bounds = array<i64: 2>, tpu.core_type = #tpu.core_type<sc_scalar_subcore>, window_params = []} {
    return
  }
}

module attributes {stable_mosaic.version = 11 : i64} {
  func.func @_lung_seg_kernel(%arg0: i32, %arg1: i32, %arg2: memref<1x2048x64xf32, #tpu.memory_space<vmem>>, %arg3: memref<1x2048xf32, #tpu.memory_space<vmem>>, %arg4: memref<64x256xf32, #tpu.memory_space<vmem>>, %arg5: memref<1x1xf32, #tpu.memory_space<vmem>>, %arg6: memref<1x1x256xf32, #tpu.memory_space<vmem>>, %arg7: memref<1x64xf32, #tpu.memory_space<vmem>>) attributes {dimension_semantics = [#tpu.dimension_semantics<parallel>, #tpu.dimension_semantics<arbitrary>], iteration_bounds = array<i64: 2, 1>, scalar_prefetch = 0 : i64, scratch_operands = 1 : i64, tpu.core_type = #tpu.core_type<tc>, window_params = [{transform_indices = @transform_0, window_bounds = array<i64: 1, 2048, 64>}, {transform_indices = @transform_1, window_bounds = array<i64: 1, 2048>}, {pipeline_mode = #tpu.pipeline_mode<synchronous>, transform_indices = @transform_2, window_bounds = array<i64: 64, 256>}, {pipeline_mode = #tpu.pipeline_mode<synchronous>, transform_indices = @transform_3, window_bounds = array<i64: 1, 1>}, {transform_indices = @transform_4, window_bounds = array<i64: 1, 1, 256>}]} {
    %c0_i32 = arith.constant 0 : i32
    %0 = arith.cmpi eq, %arg1, %c0_i32 : i32
    %1 = arith.extui %0 : i1 to i32
    %c0_i32_0 = arith.constant 0 : i32
    %2 = arith.cmpi ne, %1, %c0_i32_0 : i32
    scf.if %2 {
      %cst_11 = arith.constant 0.000000e+00 : f32
      %13 = vector.broadcast %cst_11 : f32 to vector<1x64xf32>
      %c0_12 = arith.constant 0 : index
      %c0_13 = arith.constant 0 : index
      %14 = vector.load %arg7[%c0_12, %c0_13] : memref<1x64xf32, #tpu.memory_space<vmem>>, vector<1x64xf32>
      tpu.vector_store %arg7[%c0_12, %c0_13], %13 {strides = array<i32>} : memref<1x64xf32, #tpu.memory_space<vmem>>, vector<1x64xf32>,
    } else {
    }
    %c0 = arith.constant 0 : index
    %c0_1 = arith.constant 0 : index
    %3 = vector.load %arg7[%c0, %c0_1] : memref<1x64xf32, #tpu.memory_space<vmem>>, vector<1x64xf32>
    %c0_2 = arith.constant 0 : index
    %c0_3 = arith.constant 0 : index
    %4 = vector.load %arg3[%c0_2, %c0_3] : memref<1x2048xf32, #tpu.memory_space<vmem>>, vector<1x2048xf32>
    %c0_4 = arith.constant 0 : index
    %c0_5 = arith.constant 0 : index
    %c0_6 = arith.constant 0 : index
    %5 = vector.load %arg2[%c0_4, %c0_5, %c0_6] : memref<1x2048x64xf32, #tpu.memory_space<vmem>>, vector<1x2048x64xf32>
    %6 = vector.shape_cast %5 : vector<1x2048x64xf32> to vector<2048x64xf32>
    %cst = arith.constant dense<0.000000e+00> : vector<1x64xf32>
    %7 = tpu.matmul %4, %6, %cst {dimension_numbers = #tpu.dot_dimension_numbers<[1], [0], [0], [1], [0, 0, 1, 1], [], []>} : vector<1x2048xf32>, vector<2048x64xf32>, vector<1x64xf32> -> vector<1x64xf32>
    %8 = arith.addf %3, %7 : vector<1x64xf32>
    %c0_7 = arith.constant 0 : index
    %c0_8 = arith.constant 0 : index
    %9 = vector.load %arg7[%c0_7, %c0_8] : memref<1x64xf32, #tpu.memory_space<vmem>>, vector<1x64xf32>
    tpu.vector_store %arg7[%c0_7, %c0_8], %8 {strides = array<i32>} : memref<1x64xf32, #tpu.memory_space<vmem>>, vector<1x64xf32>,
    %c0_i32_9 = arith.constant 0 : i32
    %10 = arith.cmpi eq, %arg1, %c0_i32_9 : i32
    %11 = arith.extui %10 : i1 to i32
    %c0_i32_10 = arith.constant 0 : i32
    %12 = arith.cmpi ne, %11, %c0_i32_10 : i32
    scf.if %12 {
      %c0_11 = arith.constant 0 : index
      %c0_12 = arith.constant 0 : index
      %13 = vector.load %arg7[%c0_11, %c0_12] : memref<1x64xf32, #tpu.memory_space<vmem>>, vector<1x64xf32>
      %c0_13 = arith.constant 0 : index
      %c0_14 = arith.constant 0 : index
      %14 = vector.load %arg4[%c0_13, %c0_14] : memref<64x256xf32, #tpu.memory_space<vmem>>, vector<64x256xf32>
      %cst_15 = arith.constant dense<0.000000e+00> : vector<1x256xf32>
      %15 = tpu.matmul %13, %14, %cst_15 {dimension_numbers = #tpu.dot_dimension_numbers<[1], [0], [0], [1], [0, 0, 1, 1], [], []>} : vector<1x64xf32>, vector<64x256xf32>, vector<1x256xf32> -> vector<1x256xf32>
      %c0_16 = arith.constant 0 : index
      %c0_17 = arith.constant 0 : index
      %16 = vector.load %arg5[%c0_16, %c0_17] : memref<1x1xf32, #tpu.memory_space<vmem>>, vector<1x1xf32>
      %cst_18 = arith.constant 0.000000e+00 : f32
      %17 = vector.broadcast %cst_18 : f32 to vector<1x1xf32>
      %18 = arith.subf %17, %16 : vector<1x1xf32>
      %19 = vector.broadcast %18 : vector<1x1xf32> to vector<1x256xf32>
      %20 = arith.cmpf ogt, %15, %19 : vector<1x256xf32>
      %21 = arith.extui %20 : vector<1x256xi1> to vector<1x256xi32>
      %22 = arith.sitofp %21 : vector<1x256xi32> to vector<1x256xf32>
      %c0_19 = arith.constant 0 : index
      %c0_20 = arith.constant 0 : index
      %c0_21 = arith.constant 0 : index
      %23 = vector.load %arg6[%c0_19, %c0_20, %c0_21] : memref<1x1x256xf32, #tpu.memory_space<vmem>>, vector<1x1x256xf32>
      %24 = vector.shape_cast %23 : vector<1x1x256xf32> to vector<1x256xf32>
      %25 = vector.shape_cast %22 : vector<1x256xf32> to vector<1x1x256xf32>
      tpu.vector_store %arg6[%c0_19, %c0_20, %c0_21], %25 {strides = array<i32>} : memref<1x1x256xf32, #tpu.memory_space<vmem>>, vector<1x1x256xf32>,
    } else {
    }
    return
  }
  func.func @transform_0(%arg0: i32, %arg1: i32) -> (i32, i32, i32) {
    %c0_i32 = arith.constant 0 : i32
    %c0_i32_0 = arith.constant 0 : i32
    return %arg0, %arg1, %c0_i32 : i32, i32, i32
  }
  func.func @transform_1(%arg0: i32, %arg1: i32) -> (i32, i32) {
    %c0_i32 = arith.constant 0 : i32
    %c0_i32_0 = arith.constant 0 : i32
    return %c0_i32, %arg1 : i32, i32
  }
  func.func @transform_2(%arg0: i32, %arg1: i32) -> (i32, i32) {
    %c0_i32 = arith.constant 0 : i32
    %c0_i32_0 = arith.constant 0 : i32
    %c0_i32_1 = arith.constant 0 : i32
    return %c0_i32, %c0_i32_0 : i32, i32
  }
  func.func @transform_3(%arg0: i32, %arg1: i32) -> (i32, i32) {
    %c0_i32 = arith.constant 0 : i32
    %c0_i32_0 = arith.constant 0 : i32
    %c0_i32_1 = arith.constant 0 : i32
    return %c0_i32, %c0_i32_0 : i32, i32
  }
  func.func @transform_4(%arg0: i32, %arg1: i32) -> (i32, i32, i32) {
    %c0_i32 = arith.constant 0 : i32
    %c0_i32_0 = arith.constant 0 : i32
    %c0_i32_1 = arith.constant 0 : i32
    return %arg0, %c0_i32, %c0_i32_0 : i32, i32, i32
  }
}

</mosaic_0001>

<llo_original>
// kernel: lung_segmentation_forward.1
$region0: #{lung_segmentation_forward.1}
  #allocation0 [shape = 'u32[]', space=smem, size = 0x4, offset = 0x4, fixed_abs, tag = 'smem constant byte address 0x4 - core index']
  #allocation1 [shape = 'u32[144,128]{1,0:T(1,128)}', space=vmem, size = 0x12000, scoped, tag = 'internal scratch']
  #allocation2 [shape = 'f32[1,64]{1,0:T(1,128)}', space=vmem, size = 0x200, scoped, tag = 'scratch operand']
  #allocation3 [shape = 'f32[1,1]{1,0:T(1,128)S(1)}', space=vmem, size = 0x200, scoped, tag = 'scoped memory for lung_segmentation_forward.1']
  %s0 = inlined_call_operand.vmem [shape: f32[2,2048,64], index: 0, kind: input, shape index: {}]
  %s1 = inlined_call_operand.vmem [shape: f32[1,2048], index: 1, kind: input, shape index: {}]
  %s2 = inlined_call_operand.vmem [shape: f32[64,256], index: 2, kind: input, shape index: {}]
  %s3 = inlined_call_operand.<no memory space> [shape: f32[1,1], index: 3, kind: input, shape index: {}]
  %s4 = inlined_call_operand.vmem [shape: f32[2,1,256], index: 4, kind: output, shape index: {}]
  %s5 = sld [smem:[#allocation0]]
  $region57: #{lung_segmentation_forward.1} parent=0
    _
  %s7 = ssub.s32 1, %s5
  %s8 = scalar_select 0, %s7, %s5
  %v9 = vstv %s3
  %10 = vst [vmem:[#allocation3] sm:$0x1] %v9
  loop: start=0, step=1, limit=4
  $region2: #{lung_segmentation_forward.1} parent=0 // loop_pre_header
    _
  $region3: #{lung_segmentation_forward.1} parent=0 // loop_header
    %s12 = sphi 0, %s16
    %p13 = scmp.ge.s32.totalorder %s12, 4
    %s19 = sphi 0, %s31
    %s20 = sphi 0, %s27
    %s21 = sphi 0, %s19
    %s22 = sphi 0, %s20
    %s23 = sphi 0, %s21
    %s24 = sphi 0, %s22
    %s36 = sphi 0, %s38
    %s39 = sphi 0, %s36
    %s40 = sphi 0, %s39
    %s56 = sphi 0, %s40
    %s62 = sphi 0, %s64
    %s65 = sphi 0, %s62
    %s66 = sphi 0, %s65
    %s82 = sphi 0, %s66
    %s86 = sphi 0, %s86
    %s88 = sphi 0, %s86
    %s89 = sphi 0, %s88
    %s103 = sphi 0, %s89
    %s107 = sphi 0, %s107
    %s109 = sphi 0, %s107
    %s110 = sphi 0, %s109
    %s124 = sphi 0, %s110
    %s130 = sphi 0, %s132
    %s133 = sphi 0, %s130
    %s134 = sphi 0, %s133
    %s150 = sphi 0, %s134
  $region4: #{lung_segmentation_forward.1} parent=0 // loop_header_branch
    %15 = sbr.rel (%p13) target = $region8
  $region5: #{lung_segmentation_forward.1} parent=0 // loop_body
    %s17 = ssub.s32 %s12, 1
    %s18 = ssub.s32 %s12, 2
    %s25 = sadd.s32 1, %s20
    %p26 = scmp.ge.s32.totalorder %s25, 1
    %s27 = scalar_select %p26, 0, %s25
    %s28 = sadd.s32 1, %s19
    %s29 = scalar_select %p26, %s28, %s19
    %p30 = scmp.ge.s32.totalorder %s29, 2
    %s31 = scalar_select %p30, 0, %s29
    %s32 = ssub.s32 %s19, %s31
    %s33 = ssub.s32 %s20, %s27
    %s34 = sor.u32 %s32, %s33
    %p35 = scmp.eq.s32.totalorder %s34, 0
    %s37 = sadd.s32 %s36, 1
    %s38 = scalar_select %p35, %s36, %s37
    %p41 = pneg %p35
    %p42 = scmp.eq.s32.totalorder %s12, 1
    %p43 = por %p41, %p42
    %p44 = scmp.ne.s32.totalorder %s36, %s39
    %p45 = scmp.eq.s32.totalorder %s12, 0
    %p46 = por %p44, %p45
    %p47 = scmp.ne.s32.totalorder %s36, %s39
    %p48 = scmp.eq.s32.totalorder %s17, 1
    %p49 = por %p47, %p48
    %p50 = scmp.ne.s32.totalorder %s39, %s40
    %p51 = scmp.eq.s32.totalorder %s17, 0
    %p52 = por %p50, %p51
    %p53 = scmp.ne.s32.totalorder %s39, %s40
    %p54 = scmp.eq.s32.totalorder %s18, 1
    %p55 = por %p53, %p54
    %p57 = scmp.ne.s32.totalorder %s40, %s56
    %p58 = scmp.eq.s32.totalorder %s18, 0
    %p59 = por %p57, %p58
    %s60 = ssub.s32 %s20, %s27
    %p61 = scmp.eq.s32.totalorder %s60, 0
    %s63 = sadd.s32 %s62, 1
    %s64 = scalar_select %p61, %s62, %s63
    %p67 = pneg %p61
    %p68 = scmp.eq.s32.totalorder %s12, 1
    %p69 = por %p67, %p68
    %p70 = scmp.ne.s32.totalorder %s62, %s65
    %p71 = scmp.eq.s32.totalorder %s12, 0
    %p72 = por %p70, %p71
    %p73 = scmp.ne.s32.totalorder %s62, %s65
    %p74 = scmp.eq.s32.totalorder %s17, 1
    %p75 = por %p73, %p74
    %p76 = scmp.ne.s32.totalorder %s65, %s66
    %p77 = scmp.eq.s32.totalorder %s17, 0
    %p78 = por %p76, %p77
    %p79 = scmp.ne.s32.totalorder %s65, %s66
    %p80 = scmp.eq.s32.totalorder %s18, 1
    %p81 = por %p79, %p80
    %p83 = scmp.ne.s32.totalorder %s66, %s82
    %p84 = scmp.eq.s32.totalorder %s18, 0
    %p85 = por %p83, %p84
    %s87 = sadd.s32 %s86, 1
    %p90 = scmp.eq.s32.totalorder %s12, 1
    %p91 = scmp.ne.s32.totalorder %s86, %s88
    %p92 = scmp.eq.s32.totalorder %s12, 0
    %p93 = por %p91, %p92
    %p94 = scmp.ne.s32.totalorder %s86, %s88
    %p95 = scmp.eq.s32.totalorder %s17, 1
    %p96 = por %p94, %p95
    %p97 = scmp.ne.s32.totalorder %s88, %s89
    %p98 = scmp.eq.s32.totalorder %s17, 0
    %p99 = por %p97, %p98
    %p100 = scmp.ne.s32.totalorder %s88, %s89
    %p101 = scmp.eq.s32.totalorder %s18, 1
    %p102 = por %p100, %p101
    %p104 = scmp.ne.s32.totalorder %s89, %s103
    %p105 = scmp.eq.s32.totalorder %s18, 0
    %p106 = por %p104, %p105
    %s108 = sadd.s32 %s107, 1
    %p111 = scmp.eq.s32.totalorder %s12, 1
    %p112 = scmp.ne.s32.totalorder %s107, %s109
    %p113 = scmp.eq.s32.totalorder %s12, 0
    %p114 = por %p112, %p113
    %p115 = scmp.ne.s32.totalorder %s107, %s109
    %p116 = scmp.eq.s32.totalorder %s17, 1
    %p117 = por %p115, %p116
    %p118 = scmp.ne.s32.totalorder %s109, %s110
    %p119 = scmp.eq.s32.totalorder %s17, 0
    %p120 = por %p118, %p119
    %p121 = scmp.ne.s32.totalorder %s109, %s110
    %p122 = scmp.eq.s32.totalorder %s18, 1
    %p123 = por %p121, %p122
    %p125 = scmp.ne.s32.totalorder %s110, %s124
    %p126 = scmp.eq.s32.totalorder %s18, 0
    %p127 = por %p125, %p126
    %s128 = ssub.s32 %s19, %s31
    %p129 = scmp.eq.s32.totalorder %s128, 0
    %s131 = sadd.s32 %s130, 1
    %s132 = scalar_select %p129, %s130, %s131
    %p135 = pneg %p129
    %p136 = scmp.eq.s32.totalorder %s12, 1
    %p137 = por %p135, %p136
    %p138 = scmp.ne.s32.totalorder %s130, %s133
    %p139 = scmp.eq.s32.totalorder %s12, 0
    %p140 = por %p138, %p139
    %p141 = scmp.ne.s32.totalorder %s130, %s133
    %p142 = scmp.eq.s32.totalorder %s17, 1
    %p143 = por %p141, %p142
    %p144 = scmp.ne.s32.totalorder %s133, %s134
    %p145 = scmp.eq.s32.totalorder %s17, 0
    %p146 = por %p144, %p145
    %p147 = scmp.ne.s32.totalorder %s133, %s134
    %p148 = scmp.eq.s32.totalorder %s18, 1
    %p149 = por %p147, %p148
    %p151 = scmp.ne.s32.totalorder %s134, %s150
    %p152 = scmp.eq.s32.totalorder %s18, 0
    %p153 = por %p151, %p152
    %p154 = scmp.le.s32.totalorder 1, %s12
    %p155 = scmp.lt.s32.totalorder %s12, 3
    %p156 = pnand %p154, %p155
    %p157 = pneg %p156
    // Predicated region
    $region9: #{lung_segmentation_forward.1} parent=5 // pred_check
      _
    $region10: #{lung_segmentation_forward.1} parent=5 // pred_check_branch
      %159 = sbr.rel (%p156) target = $region12
    $region11: #{lung_segmentation_forward.1} parent=5 // pred_region
      %s160 = ssub.s32 %s12, 1
      // Predicated region
      $region13: #{lung_segmentation_forward.1} parent=11 // pred_check
        %p161 = pneg %p78
      $region14: #{lung_segmentation_forward.1} parent=11 // pred_check_branch
        %163 = sbr.rel (%p161) target = $region16
      $region15: #{lung_segmentation_forward.1} parent=11 // pred_region
        %s164 = smul.u32 16, %s22
        %p165 = scmp.lt.s32.totalorder %s164, 15
        %s166 = scalar_select %p165, %s164, 15
        %s167 = scalar_lea.vmem %s1, %s166
        %s168 = smul.u32 16, %s22
      $region16: #{lung_segmentation_forward.1} parent=11 // pred_fallthru
        _
      // Predicated region
      $region17: #{lung_segmentation_forward.1} parent=11 // pred_check
        %p169 = pneg %p99
      $region18: #{lung_segmentation_forward.1} parent=11 // pred_check_branch
        %171 = sbr.rel (%p169) target = $region20
      $region19: #{lung_segmentation_forward.1} parent=11 // pred_region
        _
      $region20: #{lung_segmentation_forward.1} parent=11 // pred_fallthru
        _
      // Predicated region
      $region21: #{lung_segmentation_forward.1} parent=11 // pred_check
        %p172 = pneg %p120
      $region22: #{lung_segmentation_forward.1} parent=11 // pred_check_branch
        %174 = sbr.rel (%p172) target = $region24
      $region23: #{lung_segmentation_forward.1} parent=11 // pred_region
        _
      $region24: #{lung_segmentation_forward.1} parent=11 // pred_fallthru
        _
    $region12: #{lung_segmentation_forward.1} parent=5 // pred_fallthru
      _
    %p175 = scmp.lt.s32.totalorder %s12, 2
    // Predicated region
    $region25: #{lung_segmentation_forward.1} parent=5 // pred_check
      %p176 = pneg %p175
    $region26: #{lung_segmentation_forward.1} parent=5 // pred_check_branch
      %178 = sbr.rel (%p176) target = $region28
    $region27: #{lung_segmentation_forward.1} parent=5 // pred_region
      // Predicated region
      $region29: #{lung_segmentation_forward.1} parent=27 // pred_check
        %p179 = pneg %p46
      $region30: #{lung_segmentation_forward.1} parent=27 // pred_check_branch
        %181 = sbr.rel (%p179) target = $region32
      $region31: #{lung_segmentation_forward.1} parent=27 // pred_region
        %s182 = smul.u32 256, %s20
        %p183 = scmp.lt.s32.totalorder %s19, 1
        %s184 = scalar_select %p183, %s19, 1
        %p185 = scmp.lt.s32.totalorder %s182, 255
        %s186 = scalar_select %p185, %s182, 255
        %s187 = smul.addr %s184, 256
        %s188 = sadd.s32 %s186, %s187
        %s189 = smul.addr %s188, 8
        %s190 = scalar_lea.vmem %s0, %s189
        %s191 = smul.u32 256, %s20
      $region32: #{lung_segmentation_forward.1} parent=27 // pred_fallthru
        _
    $region28: #{lung_segmentation_forward.1} parent=5 // pred_fallthru
      _
    %p192 = scmp.le.s32.totalorder 1, %s12
    %p193 = scmp.lt.s32.totalorder %s12, 3
    %p194 = pnand %p192, %p193
    %p195 = pneg %p194
    // Predicated region
    $region33: #{lung_segmentation_forward.1} parent=5 // pred_check
      _
    $region34: #{lung_segmentation_forward.1} parent=5 // pred_check_branch
      %197 = sbr.rel (%p194) target = $region36
    $region35: #{lung_segmentation_forward.1} parent=5 // pred_region
      %s198 = ssub.s32 %s12, 1
      %s199 = smul.u32 256, %s22
      %p200 = scmp.lt.s32.totalorder %s21, 1
      %s201 = scalar_select %p200, %s21, 1
      %p202 = scmp.lt.s32.totalorder %s199, 255
      %s203 = scalar_select %p202, %s199, 255
      %s204 = smul.addr %s201, 256
      %s205 = sadd.s32 %s203, %s204
      %s206 = smul.addr %s205, 8
      %s207 = scalar_lea.vmem %s0, %s206
      %p208 = pneg %p52
      %p209 = pneg %p49
      %s210 = smul.u32 16, %s22
      %p211 = scmp.lt.s32.totalorder %s210, 15
      %s212 = scalar_select %p211, %s210, 15
      %s213 = scalar_lea.vmem %s1, %s212
      %p214 = pneg %p78
      %p215 = pneg %p75
      %p216 = pneg %p99
      %p217 = pneg %p96
      %p218 = pneg %p120
      %p219 = pneg %p117
      %p220 = pneg %p146
      %p221 = pneg %p143
      %p222 = scmp.lt.s32.totalorder %s21, 1
      %s223 = scalar_select %p222, %s21, 1
      %s224 = smul.addr %s223, 2
      %s225 = scalar_lea.vmem %s4, %s224
      %s226 = smul.u32 256, %s22
      %p227 = scmp.lt.s32.totalorder %s21, 1
      %s228 = scalar_select %p227, %s21, 1
      %p229 = scmp.lt.s32.totalorder %s226, 255
      %s230 = scalar_select %p229, %s226, 255
      %s231 = smul.addr %s228, 256
      %s232 = sadd.s32 %s230, %s231
      %s233 = smul.addr %s232, 8
      %s234 = scalar_lea.vmem %s0, %s233
      %s235 = smul.u32 256, %s22
      %s236 = smul.u32 16, %s22
      %p237 = scmp.lt.s32.totalorder %s236, 15
      %s238 = scalar_select %p237, %s236, 15
      %s239 = scalar_lea.vmem %s1, %s238
      %s240 = smul.u32 16, %s22
      %p241 = scmp.lt.s32.totalorder %s21, 1
      %s242 = scalar_select %p241, %s21, 1
      %s243 = smul.addr %s242, 2
      %s244 = scalar_lea.vmem %s4, %s243
      %p245 = scmp.eq.s32.totalorder %s22, 0
      // Predicated region
      $region37: #{lung_segmentation_forward.1} parent=35 // pred_check
        %p246 = pneg %p245
      $region38: #{lung_segmentation_forward.1} parent=35 // pred_check_branch
        %248 = sbr.rel (%p246) target = $region40
      $region39: #{lung_segmentation_forward.1} parent=35 // pred_region
        %vm249 = vcmask 516096
        %250 = vst.msk [vmem:[#allocation2] sm:$0x1] %vm249, 0.0
      $region40: #{lung_segmentation_forward.1} parent=35 // pred_fallthru
        _
      %v251 = vld [vmem:[#allocation2] sm:$0x1]
      %v252 = vld [vmem:[%s239] sm:$0xff]
      %v253 = vld [vmem:[%s239 + $0x8] sm:$0xff]
      %v254 = vld [vmem:[%s234] sm:$0xff]
      %v255 = vld [vmem:[%s234 + $0x8] sm:$0xff]
      %v256 = vld [vmem:[%s234 + $0x10] sm:$0xff]
      %v257 = vld [vmem:[%s234 + $0x18] sm:$0xff]
      %v258 = vld [vmem:[%s234 + $0x20] sm:$0xff]
      %v259 = vld [vmem:[%s234 + $0x28] sm:$0xff]
      %v260 = vld [vmem:[%s234 + $0x30] sm:$0xff]
      %v261 = vld [vmem:[%s234 + $0x38] sm:$0xff]
      %v262 = vld [vmem:[%s234 + $0x40] sm:$0xff]
      %v263 = vld [vmem:[%s234 + $0x48] sm:$0xff]
      %v264 = vld [vmem:[%s234 + $0x50] sm:$0xff]
      %v265 = vld [vmem:[%s234 + $0x58] sm:$0xff]
      %v266 = vld [vmem:[%s234 + $0x60] sm:$0xff]
      %v267 = vld [vmem:[%s234 + $0x68] sm:$0xff]
      %v268 = vld [vmem:[%s234 + $0x70] sm:$0xff]
      %v269 = vld [vmem:[%s234 + $0x78] sm:$0xff]
      %v270 = vld [vmem:[%s234 + $0x80] sm:$0xff]
      %v271 = vld [vmem:[%s234 + $0x88] sm:$0xff]
      %v272 = vld [vmem:[%s234 + $0x90] sm:$0xff]
      %v273 = vld [vmem:[%s234 + $0x98] sm:$0xff]
      %v274 = vld [vmem:[%s234 + $0xa0] sm:$0xff]
      %v275 = vld [vmem:[%s234 + $0xa8] sm:$0xff]
      %v276 = vld [vmem:[%s234 + $0xb0] sm:$0xff]
      %v277 = vld [vmem:[%s234 + $0xb8] sm:$0xff]
      %v278 = vld [vmem:[%s234 + $0xc0] sm:$0xff]
      %v279 = vld [vmem:[%s234 + $0xc8] sm:$0xff]
      %v280 = vld [vmem:[%s234 + $0xd0] sm:$0xff]
      %v281 = vld [vmem:[%s234 + $0xd8] sm:$0xff]
      %v282 = vld [vmem:[%s234 + $0xe0] sm:$0xff]
      %v283 = vld [vmem:[%s234 + $0xe8] sm:$0xff]
      %v284 = vld [vmem:[%s234 + $0xf0] sm:$0xff]
      %v285 = vld [vmem:[%s234 + $0xf8] sm:$0xff]
      %v286 = vld [vmem:[%s234 + $0x100] sm:$0xff]
      %v287 = vld [vmem:[%s234 + $0x108] sm:$0xff]
      %v288 = vld [vmem:[%s234 + $0x110] sm:$0xff]
      %v289 = vld [vmem:[%s234 + $0x118] sm:$0xff]
      %v290 = vld [vmem:[%s234 + $0x120] sm:$0xff]
      %v291 = vld [vmem:[%s234 + $0x128] sm:$0xff]
      %v292 = vld [vmem:[%s234 + $0x130] sm:$0xff]
      %v293 = vld [vmem:[%s234 + $0x138] sm:$0xff]
      %v294 = vld [vmem:[%s234 + $0x140] sm:$0xff]
      %v295 = vld [vmem:[%s234 + $0x148] sm:$0xff]
      %v296 = vld [vmem:[%s234 + $0x150] sm:$0xff]
      %v297 = vld [vmem:[%s234 + $0x158] sm:$0xff]
      %v298 = vld [vmem:[%s234 + $0x160] sm:$0xff]
      %v299 = vld [vmem:[%s234 + $0x168] sm:$0xff]
      %v300 = vld [vmem:[%s234 + $0x170] sm:$0xff]
      %v301 = vld [vmem:[%s234 + $0x178] sm:$0xff]
      %v302 = vld [vmem:[%s234 + $0x180] sm:$0xff]
      %v303 = vld [vmem:[%s234 + $0x188] sm:$0xff]
      %v304 = vld [vmem:[%s234 + $0x190] sm:$0xff]
      %v305 = vld [vmem:[%s234 + $0x198] sm:$0xff]
      %v306 = vld [vmem:[%s234 + $0x1a0] sm:$0xff]
      %v307 = vld [vmem:[%s234 + $0x1a8] sm:$0xff]
      %v308 = vld [vmem:[%s234 + $0x1b0] sm:$0xff]
      %v309 = vld [vmem:[%s234 + $0x1b8] sm:$0xff]
      %v310 = vld [vmem:[%s234 + $0x1c0] sm:$0xff]
      %v311 = vld [vmem:[%s234 + $0x1c8] sm:$0xff]
      %v312 = vld [vmem:[%s234 + $0x1d0] sm:$0xff]
      %v313 = vld [vmem:[%s234 + $0x1d8] sm:$0xff]
      %v314 = vld [vmem:[%s234 + $0x1e0] sm:$0xff]
      %v315 = vld [vmem:[%s234 + $0x1e8] sm:$0xff]
      %v316 = vld [vmem:[%s234 + $0x1f0] sm:$0xff]
      %v317 = vld [vmem:[%s234 + $0x1f8] sm:$0xff]
      %v318 = vld [vmem:[%s234 + $0x200] sm:$0xff]
      %v319 = vld [vmem:[%s234 + $0x208] sm:$0xff]
      %v320 = vld [vmem:[%s234 + $0x210] sm:$0xff]
      %v321 = vld [vmem:[%s234 + $0x218] sm:$0xff]
      %v322 = vld [vmem:[%s234 + $0x220] sm:$0xff]
      %v323 = vld [vmem:[%s234 + $0x228] sm:$0xff]
      %v324 = vld [vmem:[%s234 + $0x230] sm:$0xff]
      %v325 = vld [vmem:[%s234 + $0x238] sm:$0xff]
      %v326 = vld [vmem:[%s234 + $0x240] sm:$0xff]
      %v327 = vld [vmem:[%s234 + $0x248] sm:$0xff]
      %v328 = vld [vmem:[%s234 + $0x250] sm:$0xff]
      %v329 = vld [vmem:[%s234 + $0x258] sm:$0xff]
      %v330 = vld [vmem:[%s234 + $0x260] sm:$0xff]
      %v331 = vld [vmem:[%s234 + $0x268] sm:$0xff]
      %v332 = vld [vmem:[%s234 + $0x270] sm:$0xff]
      %v333 = vld [vmem:[%s234 + $0x278] sm:$0xff]
      %v334 = vld [vmem:[%s234 + $0x280] sm:$0xff]
      %v335 = vld [vmem:[%s234 + $0x288] sm:$0xff]
      %v336 = vld [vmem:[%s234 + $0x290] sm:$0xff]
      %v337 = vld [vmem:[%s234 + $0x298] sm:$0xff]
      %v338 = vld [vmem:[%s234 + $0x2a0] sm:$0xff]
      %v339 = vld [vmem:[%s234 + $0x2a8] sm:$0xff]
      %v340 = vld [vmem:[%s234 + $0x2b0] sm:$0xff]
      %v341 = vld [vmem:[%s234 + $0x2b8] sm:$0xff]
      %v342 = vld [vmem:[%s234 + $0x2c0] sm:$0xff]
      %v343 = vld [vmem:[%s234 + $0x2c8] sm:$0xff]
      %v344 = vld [vmem:[%s234 + $0x2d0] sm:$0xff]
      %v345 = vld [vmem:[%s234 + $0x2d8] sm:$0xff]
      %v346 = vld [vmem:[%s234 + $0x2e0] sm:$0xff]
      %v347 = vld [vmem:[%s234 + $0x2e8] sm:$0xff]
      %v348 = vld [vmem:[%s234 + $0x2f0] sm:$0xff]
      %v349 = vld [vmem:[%s234 + $0x2f8] sm:$0xff]
      %v350 = vld [vmem:[%s234 + $0x300] sm:$0xff]
      %v351 = vld [vmem:[%s234 + $0x308] sm:$0xff]
      %v352 = vld [vmem:[%s234 + $0x310] sm:$0xff]
      %v353 = vld [vmem:[%s234 + $0x318] sm:$0xff]
      %v354 = vld [vmem:[%s234 + $0x320] sm:$0xff]
      %v355 = vld [vmem:[%s234 + $0x328] sm:$0xff]
      %v356 = vld [vmem:[%s234 + $0x330] sm:$0xff]
      %v357 = vld [vmem:[%s234 + $0x338] sm:$0xff]
      %v358 = vld [vmem:[%s234 + $0x340] sm:$0xff]
      %v359 = vld [vmem:[%s234 + $0x348] sm:$0xff]
      %v360 = vld [vmem:[%s234 + $0x350] sm:$0xff]
      %v361 = vld [vmem:[%s234 + $0x358] sm:$0xff]
      %v362 = vld [vmem:[%s234 + $0x360] sm:$0xff]
      %v363 = vld [vmem:[%s234 + $0x368] sm:$0xff]
      %v364 = vld [vmem:[%s234 + $0x370] sm:$0xff]
      %v365 = vld [vmem:[%s234 + $0x378] sm:$0xff]
      %v366 = vld [vmem:[%s234 + $0x380] sm:$0xff]
      %v367 = vld [vmem:[%s234 + $0x388] sm:$0xff]
      %v368 = vld [vmem:[%s234 + $0x390] sm:$0xff]
      %v369 = vld [vmem:[%s234 + $0x398] sm:$0xff]
      %v370 = vld [vmem:[%s234 + $0x3a0] sm:$0xff]
      %v371 = vld [vmem:[%s234 + $0x3a8] sm:$0xff]
      %v372 = vld [vmem:[%s234 + $0x3b0] sm:$0xff]
      %v373 = vld [vmem:[%s234 + $0x3b8] sm:$0xff]
      %v374 = vld [vmem:[%s234 + $0x3c0] sm:$0xff]
      %v375 = vld [vmem:[%s234 + $0x3c8] sm:$0xff]
      %v376 = vld [vmem:[%s234 + $0x3d0] sm:$0xff]
      %v377 = vld [vmem:[%s234 + $0x3d8] sm:$0xff]
      %v378 = vld [vmem:[%s234 + $0x3e0] sm:$0xff]
      %v379 = vld [vmem:[%s234 + $0x3e8] sm:$0xff]
      %v380 = vld [vmem:[%s234 + $0x3f0] sm:$0xff]
      %v381 = vld [vmem:[%s234 + $0x3f8] sm:$0xff]
      %v382 = vld [vmem:[%s234 + $0x400] sm:$0xff]
      %v383 = vld [vmem:[%s234 + $0x408] sm:$0xff]
      %v384 = vld [vmem:[%s234 + $0x410] sm:$0xff]
      %v385 = vld [vmem:[%s234 + $0x418] sm:$0xff]
      %v386 = vld [vmem:[%s234 + $0x420] sm:$0xff]
      %v387 = vld [vmem:[%s234 + $0x428] sm:$0xff]
      %v388 = vld [vmem:[%s234 + $0x430] sm:$0xff]
      %v389 = vld [vmem:[%s234 + $0x438] sm:$0xff]
      %v390 = vld [vmem:[%s234 + $0x440] sm:$0xff]
      %v391 = vld [vmem:[%s234 + $0x448] sm:$0xff]
      %v392 = vld [vmem:[%s234 + $0x450] sm:$0xff]
      %v393 = vld [vmem:[%s234 + $0x458] sm:$0xff]
      %v394 = vld [vmem:[%s234 + $0x460] sm:$0xff]
      %v395 = vld [vmem:[%s234 + $0x468] sm:$0xff]
      %v396 = vld [vmem:[%s234 + $0x470] sm:$0xff]
      %v397 = vld [vmem:[%s234 + $0x478] sm:$0xff]
      %v398 = vld [vmem:[%s234 + $0x480] sm:$0xff]
      %v399 = vld [vmem:[%s234 + $0x488] sm:$0xff]
      %v400 = vld [vmem:[%s234 + $0x490] sm:$0xff]
      %v401 = vld [vmem:[%s234 + $0x498] sm:$0xff]
      %v402 = vld [vmem:[%s234 + $0x4a0] sm:$0xff]
      %v403 = vld [vmem:[%s234 + $0x4a8] sm:$0xff]
      %v404 = vld [vmem:[%s234 + $0x4b0] sm:$0xff]
      %v405 = vld [vmem:[%s234 + $0x4b8] sm:$0xff]
      %v406 = vld [vmem:[%s234 + $0x4c0] sm:$0xff]
      %v407 = vld [vmem:[%s234 + $0x4c8] sm:$0xff]
      %v408 = vld [vmem:[%s234 + $0x4d0] sm:$0xff]
      %v409 = vld [vmem:[%s234 + $0x4d8] sm:$0xff]
      %v410 = vld [vmem:[%s234 + $0x4e0] sm:$0xff]
      %v411 = vld [vmem:[%s234 + $0x4e8] sm:$0xff]
      %v412 = vld [vmem:[%s234 + $0x4f0] sm:$0xff]
      %v413 = vld [vmem:[%s234 + $0x4f8] sm:$0xff]
      %v414 = vld [vmem:[%s234 + $0x500] sm:$0xff]
      %v415 = vld [vmem:[%s234 + $0x508] sm:$0xff]
      %v416 = vld [vmem:[%s234 + $0x510] sm:$0xff]
      %v417 = vld [vmem:[%s234 + $0x518] sm:$0xff]
      %v418 = vld [vmem:[%s234 + $0x520] sm:$0xff]
      %v419 = vld [vmem:[%s234 + $0x528] sm:$0xff]
      %v420 = vld [vmem:[%s234 + $0x530] sm:$0xff]
      %v421 = vld [vmem:[%s234 + $0x538] sm:$0xff]
      %v422 = vld [vmem:[%s234 + $0x540] sm:$0xff]
      %v423 = vld [vmem:[%s234 + $0x548] sm:$0xff]
      %v424 = vld [vmem:[%s234 + $0x550] sm:$0xff]
      %v425 = vld [vmem:[%s234 + $0x558] sm:$0xff]
      %v426 = vld [vmem:[%s234 + $0x560] sm:$0xff]
      %v427 = vld [vmem:[%s234 + $0x568] sm:$0xff]
      %v428 = vld [vmem:[%s234 + $0x570] sm:$0xff]
      %v429 = vld [vmem:[%s234 + $0x578] sm:$0xff]
      %v430 = vld [vmem:[%s234 + $0x580] sm:$0xff]
      %v431 = vld [vmem:[%s234 + $0x588] sm:$0xff]
      %v432 = vld [vmem:[%s234 + $0x590] sm:$0xff]
      %v433 = vld [vmem:[%s234 + $0x598] sm:$0xff]
      %v434 = vld [vmem:[%s234 + $0x5a0] sm:$0xff]
      %v435 = vld [vmem:[%s234 + $0x5a8] sm:$0xff]
      %v436 = vld [vmem:[%s234 + $0x5b0] sm:$0xff]
      %v437 = vld [vmem:[%s234 + $0x5b8] sm:$0xff]
      %v438 = vld [vmem:[%s234 + $0x5c0] sm:$0xff]
      %v439 = vld [vmem:[%s234 + $0x5c8] sm:$0xff]
      %v440 = vld [vmem:[%s234 + $0x5d0] sm:$0xff]
      %v441 = vld [vmem:[%s234 + $0x5d8] sm:$0xff]
      %v442 = vld [vmem:[%s234 + $0x5e0] sm:$0xff]
      %v443 = vld [vmem:[%s234 + $0x5e8] sm:$0xff]
      %v444 = vld [vmem:[%s234 + $0x5f0] sm:$0xff]
      %v445 = vld [vmem:[%s234 + $0x5f8] sm:$0xff]
      %v446 = vld [vmem:[%s234 + $0x600] sm:$0xff]
      %v447 = vld [vmem:[%s234 + $0x608] sm:$0xff]
      %v448 = vld [vmem:[%s234 + $0x610] sm:$0xff]
      %v449 = vld [vmem:[%s234 + $0x618] sm:$0xff]
      %v450 = vld [vmem:[%s234 + $0x620] sm:$0xff]
      %v451 = vld [vmem:[%s234 + $0x628] sm:$0xff]
      %v452 = vld [vmem:[%s234 + $0x630] sm:$0xff]
      %v453 = vld [vmem:[%s234 + $0x638] sm:$0xff]
      %v454 = vld [vmem:[%s234 + $0x640] sm:$0xff]
      %v455 = vld [vmem:[%s234 + $0x648] sm:$0xff]
      %v456 = vld [vmem:[%s234 + $0x650] sm:$0xff]
      %v457 = vld [vmem:[%s234 + $0x658] sm:$0xff]
      %v458 = vld [vmem:[%s234 + $0x660] sm:$0xff]
      %v459 = vld [vmem:[%s234 + $0x668] sm:$0xff]
      %v460 = vld [vmem:[%s234 + $0x670] sm:$0xff]
      %v461 = vld [vmem:[%s234 + $0x678] sm:$0xff]
      %v462 = vld [vmem:[%s234 + $0x680] sm:$0xff]
      %v463 = vld [vmem:[%s234 + $0x688] sm:$0xff]
      %v464 = vld [vmem:[%s234 + $0x690] sm:$0xff]
      %v465 = vld [vmem:[%s234 + $0x698] sm:$0xff]
      %v466 = vld [vmem:[%s234 + $0x6a0] sm:$0xff]
      %v467 = vld [vmem:[%s234 + $0x6a8] sm:$0xff]
      %v468 = vld [vmem:[%s234 + $0x6b0] sm:$0xff]
      %v469 = vld [vmem:[%s234 + $0x6b8] sm:$0xff]
      %v470 = vld [vmem:[%s234 + $0x6c0] sm:$0xff]
      %v471 = vld [vmem:[%s234 + $0x6c8] sm:$0xff]
      %v472 = vld [vmem:[%s234 + $0x6d0] sm:$0xff]
      %v473 = vld [vmem:[%s234 + $0x6d8] sm:$0xff]
      %v474 = vld [vmem:[%s234 + $0x6e0] sm:$0xff]
      %v475 = vld [vmem:[%s234 + $0x6e8] sm:$0xff]
      %v476 = vld [vmem:[%s234 + $0x6f0] sm:$0xff]
      %v477 = vld [vmem:[%s234 + $0x6f8] sm:$0xff]
      %v478 = vld [vmem:[%s234 + $0x700] sm:$0xff]
      %v479 = vld [vmem:[%s234 + $0x708] sm:$0xff]
      %v480 = vld [vmem:[%s234 + $0x710] sm:$0xff]
      %v481 = vld [vmem:[%s234 + $0x718] sm:$0xff]
      %v482 = vld [vmem:[%s234 + $0x720] sm:$0xff]
      %v483 = vld [vmem:[%s234 + $0x728] sm:$0xff]
      %v484 = vld [vmem:[%s234 + $0x730] sm:$0xff]
      %v485 = vld [vmem:[%s234 + $0x738] sm:$0xff]
      %v486 = vld [vmem:[%s234 + $0x740] sm:$0xff]
      %v487 = vld [vmem:[%s234 + $0x748] sm:$0xff]
      %v488 = vld [vmem:[%s234 + $0x750] sm:$0xff]
      %v489 = vld [vmem:[%s234 + $0x758] sm:$0xff]
      %v490 = vld [vmem:[%s234 + $0x760] sm:$0xff]
      %v491 = vld [vmem:[%s234 + $0x768] sm:$0xff]
      %v492 = vld [vmem:[%s234 + $0x770] sm:$0xff]
      %v493 = vld [vmem:[%s234 + $0x778] sm:$0xff]
      %v494 = vld [vmem:[%s234 + $0x780] sm:$0xff]
      %v495 = vld [vmem:[%s234 + $0x788] sm:$0xff]
      %v496 = vld [vmem:[%s234 + $0x790] sm:$0xff]
      %v497 = vld [vmem:[%s234 + $0x798] sm:$0xff]
      %v498 = vld [vmem:[%s234 + $0x7a0] sm:$0xff]
      %v499 = vld [vmem:[%s234 + $0x7a8] sm:$0xff]
      %v500 = vld [vmem:[%s234 + $0x7b0] sm:$0xff]
      %v501 = vld [vmem:[%s234 + $0x7b8] sm:$0xff]
      %v502 = vld [vmem:[%s234 + $0x7c0] sm:$0xff]
      %v503 = vld [vmem:[%s234 + $0x7c8] sm:$0xff]
      %v504 = vld [vmem:[%s234 + $0x7d0] sm:$0xff]
      %v505 = vld [vmem:[%s234 + $0x7d8] sm:$0xff]
      %v506 = vld [vmem:[%s234 + $0x7e0] sm:$0xff]
      %v507 = vld [vmem:[%s234 + $0x7e8] sm:$0xff]
      %v508 = vld [vmem:[%s234 + $0x7f0] sm:$0xff]
      %v509 = vld [vmem:[%s234 + $0x7f8] sm:$0xff]
      %v512 = vlaneseq
      %v513 = vshrl.u32 %v512, 7
      %v514 = vsub.s32 0, %v513
      %v515 = vrot.slane %v252, %v514
      %v516 = vlaneseq
      %v517 = vshrl.u32 %v516, 7
      %v518 = vsub.s32 1, %v517
      %v519 = vrot.slane %v252, %v518
      %v520 = vlaneseq
      %v521 = vshrl.u32 %v520, 7
      %v522 = vsub.s32 2, %v521
      %v523 = vrot.slane %v252, %v522
      %v524 = vlaneseq
      %v525 = vshrl.u32 %v524, 7
      %v526 = vsub.s32 3, %v525
      %v527 = vrot.slane %v252, %v526
      %v528 = vlaneseq
      %v529 = vshrl.u32 %v528, 7
      %v530 = vsub.s32 4, %v529
      %v531 = vrot.slane %v252, %v530
      %v532 = vlaneseq
      %v533 = vshrl.u32 %v532, 7
      %v534 = vsub.s32 5, %v533
      %v535 = vrot.slane %v252, %v534
      %v536 = vlaneseq
      %v537 = vshrl.u32 %v536, 7
      %v538 = vsub.s32 6, %v537
      %v539 = vrot.slane %v252, %v538
      %v540 = vlaneseq
      %v541 = vshrl.u32 %v540, 7
      %v542 = vsub.s32 7, %v541
      %v543 = vrot.slane %v252, %v542
      %v544 = vlaneseq
      %v545 = vshrl.u32 %v544, 7
      %v546 = vsub.s32 0, %v545
      %v547 = vrot.slane %v253, %v546
      %v548 = vlaneseq
      %v549 = vshrl.u32 %v548, 7
      %v550 = vsub.s32 1, %v549
      %v551 = vrot.slane %v253, %v550
      %v552 = vlaneseq
      %v553 = vshrl.u32 %v552, 7
      %v554 = vsub.s32 2, %v553
      %v555 = vrot.slane %v253, %v554
      %v556 = vlaneseq
      %v557 = vshrl.u32 %v556, 7
      %v558 = vsub.s32 3, %v557
      %v559 = vrot.slane %v253, %v558
      %v560 = vlaneseq
      %v561 = vshrl.u32 %v560, 7
      %v562 = vsub.s32 4, %v561
      %v563 = vrot.slane %v253, %v562
      %v564 = vlaneseq
      %v565 = vshrl.u32 %v564, 7
      %v566 = vsub.s32 5, %v565
      %v567 = vrot.slane %v253, %v566
      %v568 = vlaneseq
      %v569 = vshrl.u32 %v568, 7
      %v570 = vsub.s32 6, %v569
      %v571 = vrot.slane %v253, %v570
      %v572 = vlaneseq
      %v573 = vshrl.u32 %v572, 7
      %v574 = vsub.s32 7, %v573
      %v575 = vrot.slane %v253, %v574
      %592 = vmatprep.subr.mxu0 0.0
      %593 = vmatpush1.msra.mxu0 %v254
      %594 = vmatprep.subr.mxu0 0.0
      %595 = vmatpush1.msra.mxu0 %v255
      %596 = vmatprep.subr.mxu0 0.0
      %597 = vmatpush1.msra.mxu0 %v256
      %598 = vmatprep.subr.mxu0 0.0
      %599 = vmatpush1.msra.mxu0 %v257
      %600 = vmatprep.subr.mxu0 0.0
      %601 = vmatpush1.msra.mxu0 %v258
      %602 = vmatprep.subr.mxu0 0.0
      %603 = vmatpush1.msra.mxu0 %v259
      %604 = vmatprep.subr.mxu0 0.0
      %605 = vmatpush1.msra.mxu0 %v260
      %606 = vmatprep.subr.mxu0 0.0
      %607 = vmatpush1.msra.mxu0 %v261
      %608 = vmatprep.subr.mxu0 0.0
      %609 = vmatpush1.msra.mxu0 %v262
      %610 = vmatprep.subr.mxu0 0.0
      %611 = vmatpush1.msra.mxu0 %v263
      %612 = vmatprep.subr.mxu0 0.0
      %613 = vmatpush1.msra.mxu0 %v264
      %614 = vmatprep.subr.mxu0 0.0
      %615 = vmatpush1.msra.mxu0 %v265
      %616 = vmatprep.subr.mxu0 0.0
      %617 = vmatpush1.msra.mxu0 %v266
      %618 = vmatprep.subr.mxu0 0.0
      %619 = vmatpush1.msra.mxu0 %v267
      %620 = vmatprep.subr.mxu0 0.0
      %621 = vmatpush1.msra.mxu0 %v268
      %622 = vmatprep.subr.mxu0 0.0
      %623 = vmatpush1.msra.mxu0 %v269
      %624 = vmatprep.subr.mxu0 0.0
      %625 = vmatpush1.msra.mxu0 %v270
      %626 = vmatprep.subr.mxu0 0.0
      %627 = vmatpush1.msra.mxu0 %v271
      %628 = vmatprep.subr.mxu0 0.0
      %629 = vmatpush1.msra.mxu0 %v272
      %630 = vmatprep.subr.mxu0 0.0
      %631 = vmatpush1.msra.mxu0 %v273
      %632 = vmatprep.subr.mxu0 0.0
      %633 = vmatpush1.msra.mxu0 %v274
      %634 = vmatprep.subr.mxu0 0.0
      %635 = vmatpush1.msra.mxu0 %v275
      %636 = vmatprep.subr.mxu0 0.0
      %637 = vmatpush1.msra.mxu0 %v276
      %638 = vmatprep.subr.mxu0 0.0
      %639 = vmatpush1.msra.mxu0 %v277
      %640 = vmatprep.subr.mxu0 0.0
      %641 = vmatpush1.msra.mxu0 %v278
      %642 = vmatprep.subr.mxu0 0.0
      %643 = vmatpush1.msra.mxu0 %v279
      %644 = vmatprep.subr.mxu0 0.0
      %645 = vmatpush1.msra.mxu0 %v280
      %646 = vmatprep.subr.mxu0 0.0
      %647 = vmatpush1.msra.mxu0 %v281
      %648 = vmatprep.subr.mxu0 0.0
      %649 = vmatpush1.msra.mxu0 %v282
      %650 = vmatprep.subr.mxu0 0.0
      %651 = vmatpush1.msra.mxu0 %v283
      %652 = vmatprep.subr.mxu0 0.0
      %653 = vmatpush1.msra.mxu0 %v284
      %654 = vmatprep.subr.mxu0 0.0
      %655 = vmatpush1.msra.mxu0 %v285
      %656 = vmatprep.mubr.f32.mxu0 %v519
      %657 = vmatmul.mubr.f32.gmra.mrb[0].mxu0 %v515
      %v658 = vpop.f32.mrb[0].mxu0
      %v659 = vadd.f32 0.0, %v658
      %v660 = vpop.f32.mrb[0].mxu0
      %661 = vdwg.mxu0
      %662 = vmatprep.subr.mxu0 0.0
      %663 = vmatpush1.msra.mxu0 %v286
      %664 = vmatprep.subr.mxu0 0.0
      %665 = vmatpush1.msra.mxu0 %v287
      %666 = vmatprep.subr.mxu0 0.0
      %667 = vmatpush1.msra.mxu0 %v288
      %668 = vmatprep.subr.mxu0 0.0
      %669 = vmatpush1.msra.mxu0 %v289
      %670 = vmatprep.subr.mxu0 0.0
      %671 = vmatpush1.msra.mxu0 %v290
      %672 = vmatprep.subr.mxu0 0.0
      %673 = vmatpush1.msra.mxu0 %v291
      %674 = vmatprep.subr.mxu0 0.0
      %675 = vmatpush1.msra.mxu0 %v292
      %676 = vmatprep.subr.mxu0 0.0
      %677 = vmatpush1.msra.mxu0 %v293
      %678 = vmatprep.subr.mxu0 0.0
      %679 = vmatpush1.msra.mxu0 %v294
      %680 = vmatprep.subr.mxu0 0.0
      %681 = vmatpush1.msra.mxu0 %v295
      %682 = vmatprep.subr.mxu0 0.0
      %683 = vmatpush1.msra.mxu0 %v296
      %684 = vmatprep.subr.mxu0 0.0
      %685 = vmatpush1.msra.mxu0 %v297
      %686 = vmatprep.subr.mxu0 0.0
      %687 = vmatpush1.msra.mxu0 %v298
      %688 = vmatprep.subr.mxu0 0.0
      %689 = vmatpush1.msra.mxu0 %v299
      %690 = vmatprep.subr.mxu0 0.0
      %691 = vmatpush1.msra.mxu0 %v300
      %692 = vmatprep.subr.mxu0 0.0
      %693 = vmatpush1.msra.mxu0 %v301
      %694 = vmatprep.subr.mxu0 0.0
      %695 = vmatpush1.msra.mxu0 %v302
      %696 = vmatprep.subr.mxu0 0.0
      %697 = vmatpush1.msra.mxu0 %v303
      %698 = vmatprep.subr.mxu0 0.0
      %699 = vmatpush1.msra.mxu0 %v304
      %700 = vmatprep.subr.mxu0 0.0
      %701 = vmatpush1.msra.mxu0 %v305
      %702 = vmatprep.subr.mxu0 0.0
      %703 = vmatpush1.msra.mxu0 %v306
      %704 = vmatprep.subr.mxu0 0.0
      %705 = vmatpush1.msra.mxu0 %v307
      %706 = vmatprep.subr.mxu0 0.0
      %707 = vmatpush1.msra.mxu0 %v308
      %708 = vmatprep.subr.mxu0 0.0
      %709 = vmatpush1.msra.mxu0 %v309
      %710 = vmatprep.subr.mxu0 0.0
      %711 = vmatpush1.msra.mxu0 %v310
      %712 = vmatprep.subr.mxu0 0.0
      %713 = vmatpush1.msra.mxu0 %v311
      %714 = vmatprep.subr.mxu0 0.0
      %715 = vmatpush1.msra.mxu0 %v312
      %716 = vmatprep.subr.mxu0 0.0
      %717 = vmatpush1.msra.mxu0 %v313
      %718 = vmatprep.subr.mxu0 0.0
      %719 = vmatpush1.msra.mxu0 %v314
      %720 = vmatprep.subr.mxu0 0.0
      %721 = vmatpush1.msra.mxu0 %v315
      %722 = vmatprep.subr.mxu0 0.0
      %723 = vmatpush1.msra.mxu0 %v316
      %724 = vmatprep.subr.mxu0 0.0
      %725 = vmatpush1.msra.mxu0 %v317
      %726 = vmatprep.mubr.f32.mxu0 %v527
      %727 = vmatmul.mubr.f32.gmra.mrb[0].mxu0 %v523
      %v728 = vpop.f32.mrb[0].mxu0
      %v729 = vadd.f32 %v659, %v728
      %v730 = vpop.f32.mrb[0].mxu0
      %731 = vdwg.mxu0
      %732 = vmatprep.subr.mxu0 0.0
      %733 = vmatpush1.msra.mxu0 %v318
      %734 = vmatprep.subr.mxu0 0.0
      %735 = vmatpush1.msra.mxu0 %v319
      %736 = vmatprep.subr.mxu0 0.0
      %737 = vmatpush1.msra.mxu0 %v320
      %738 = vmatprep.subr.mxu0 0.0
      %739 = vmatpush1.msra.mxu0 %v321
      %740 = vmatprep.subr.mxu0 0.0
      %741 = vmatpush1.msra.mxu0 %v322
      %742 = vmatprep.subr.mxu0 0.0
      %743 = vmatpush1.msra.mxu0 %v323
      %744 = vmatprep.subr.mxu0 0.0
      %745 = vmatpush1.msra.mxu0 %v324
      %746 = vmatprep.subr.mxu0 0.0
      %747 = vmatpush1.msra.mxu0 %v325
      %748 = vmatprep.subr.mxu0 0.0
      %749 = vmatpush1.msra.mxu0 %v326
      %750 = vmatprep.subr.mxu0 0.0
      %751 = vmatpush1.msra.mxu0 %v327
      %752 = vmatprep.subr.mxu0 0.0
      %753 = vmatpush1.msra.mxu0 %v328
      %754 = vmatprep.subr.mxu0 0.0
      %755 = vmatpush1.msra.mxu0 %v329
      %756 = vmatprep.subr.mxu0 0.0
      %757 = vmatpush1.msra.mxu0 %v330
      %758 = vmatprep.subr.mxu0 0.0
      %759 = vmatpush1.msra.mxu0 %v331
      %760 = vmatprep.subr.mxu0 0.0
      %761 = vmatpush1.msra.mxu0 %v332
      %762 = vmatprep.subr.mxu0 0.0
      %763 = vmatpush1.msra.mxu0 %v333
      %764 = vmatprep.subr.mxu0 0.0
      %765 = vmatpush1.msra.mxu0 %v334
      %766 = vmatprep.subr.mxu0 0.0
      %767 = vmatpush1.msra.mxu0 %v335
      %768 = vmatprep.subr.mxu0 0.0
      %769 = vmatpush1.msra.mxu0 %v336
      %770 = vmatprep.subr.mxu0 0.0
      %771 = vmatpush1.msra.mxu0 %v337
      %772 = vmatprep.subr.mxu0 0.0
      %773 = vmatpush1.msra.mxu0 %v338
      %774 = vmatprep.subr.mxu0 0.0
      %775 = vmatpush1.msra.mxu0 %v339
      %776 = vmatprep.subr.mxu0 0.0
      %777 = vmatpush1.msra.mxu0 %v340
      %778 = vmatprep.subr.mxu0 0.0
      %779 = vmatpush1.msra.mxu0 %v341
      %780 = vmatprep.subr.mxu0 0.0
      %781 = vmatpush1.msra.mxu0 %v342
      %782 = vmatprep.subr.mxu0 0.0
      %783 = vmatpush1.msra.mxu0 %v343
      %784 = vmatprep.subr.mxu0 0.0
      %785 = vmatpush1.msra.mxu0 %v344
      %786 = vmatprep.subr.mxu0 0.0
      %787 = vmatpush1.msra.mxu0 %v345
      %788 = vmatprep.subr.mxu0 0.0
      %789 = vmatpush1.msra.mxu0 %v346
      %790 = vmatprep.subr.mxu0 0.0
      %791 = vmatpush1.msra.mxu0 %v347
      %792 = vmatprep.subr.mxu0 0.0
      %793 = vmatpush1.msra.mxu0 %v348
      %794 = vmatprep.subr.mxu0 0.0
      %795 = vmatpush1.msra.mxu0 %v349
      %796 = vmatprep.mubr.f32.mxu0 %v535
      %797 = vmatmul.mubr.f32.gmra.mrb[0].mxu0 %v531
      %v798 = vpop.f32.mrb[0].mxu0
      %v799 = vadd.f32 %v729, %v798
      %v800 = vpop.f32.mrb[0].mxu0
      %801 = vdwg.mxu0
      %802 = vmatprep.subr.mxu0 0.0
      %803 = vmatpush1.msra.mxu0 %v350
      %804 = vmatprep.subr.mxu0 0.0
      %805 = vmatpush1.msra.mxu0 %v351
      %806 = vmatprep.subr.mxu0 0.0
      %807 = vmatpush1.msra.mxu0 %v352
      %808 = vmatprep.subr.mxu0 0.0
      %809 = vmatpush1.msra.mxu0 %v353
      %810 = vmatprep.subr.mxu0 0.0
      %811 = vmatpush1.msra.mxu0 %v354
      %812 = vmatprep.subr.mxu0 0.0
      %813 = vmatpush1.msra.mxu0 %v355
      %814 = vmatprep.subr.mxu0 0.0
      %815 = vmatpush1.msra.mxu0 %v356
      %816 = vmatprep.subr.mxu0 0.0
      %817 = vmatpush1.msra.mxu0 %v357
      %818 = vmatprep.subr.mxu0 0.0
      %819 = vmatpush1.msra.mxu0 %v358
      %820 = vmatprep.subr.mxu0 0.0
      %821 = vmatpush1.msra.mxu0 %v359
      %822 = vmatprep.subr.mxu0 0.0
      %823 = vmatpush1.msra.mxu0 %v360
      %824 = vmatprep.subr.mxu0 0.0
      %825 = vmatpush1.msra.mxu0 %v361
      %826 = vmatprep.subr.mxu0 0.0
      %827 = vmatpush1.msra.mxu0 %v362
      %828 = vmatprep.subr.mxu0 0.0
      %829 = vmatpush1.msra.mxu0 %v363
      %830 = vmatprep.subr.mxu0 0.0
      %831 = vmatpush1.msra.mxu0 %v364
      %832 = vmatprep.subr.mxu0 0.0
      %833 = vmatpush1.msra.mxu0 %v365
      %834 = vmatprep.subr.mxu0 0.0
      %835 = vmatpush1.msra.mxu0 %v366
      %836 = vmatprep.subr.mxu0 0.0
      %837 = vmatpush1.msra.mxu0 %v367
      %838 = vmatprep.subr.mxu0 0.0
      %839 = vmatpush1.msra.mxu0 %v368
      %840 = vmatprep.subr.mxu0 0.0
      %841 = vmatpush1.msra.mxu0 %v369
      %842 = vmatprep.subr.mxu0 0.0
      %843 = vmatpush1.msra.mxu0 %v370
      %844 = vmatprep.subr.mxu0 0.0
      %845 = vmatpush1.msra.mxu0 %v371
      %846 = vmatprep.subr.mxu0 0.0
      %847 = vmatpush1.msra.mxu0 %v372
      %848 = vmatprep.subr.mxu0 0.0
      %849 = vmatpush1.msra.mxu0 %v373
      %850 = vmatprep.subr.mxu0 0.0
      %851 = vmatpush1.msra.mxu0 %v374
      %852 = vmatprep.subr.mxu0 0.0
      %853 = vmatpush1.msra.mxu0 %v375
      %854 = vmatprep.subr.mxu0 0.0
      %855 = vmatpush1.msra.mxu0 %v376
      %856 = vmatprep.subr.mxu0 0.0
      %857 = vmatpush1.msra.mxu0 %v377
      %858 = vmatprep.subr.mxu0 0.0
      %859 = vmatpush1.msra.mxu0 %v378
      %860 = vmatprep.subr.mxu0 0.0
      %861 = vmatpush1.msra.mxu0 %v379
      %862 = vmatprep.subr.mxu0 0.0
      %863 = vmatpush1.msra.mxu0 %v380
      %864 = vmatprep.subr.mxu0 0.0
      %865 = vmatpush1.msra.mxu0 %v381
      %866 = vmatprep.mubr.f32.mxu0 %v543
      %867 = vmatmul.mubr.f32.gmra.mrb[0].mxu0 %v539
      %v868 = vpop.f32.mrb[0].mxu0
      %v869 = vadd.f32 %v799, %v868
      %v870 = vpop.f32.mrb[0].mxu0
      %871 = vdwg.mxu0
      %872 = vmatprep.subr.mxu0 0.0
      %873 = vmatpush1.msra.mxu0 %v382
      %874 = vmatprep.subr.mxu0 0.0
      %875 = vmatpush1.msra.mxu0 %v383
      %876 = vmatprep.subr.mxu0 0.0
      %877 = vmatpush1.msra.mxu0 %v384
      %878 = vmatprep.subr.mxu0 0.0
      %879 = vmatpush1.msra.mxu0 %v385
      %880 = vmatprep.subr.mxu0 0.0
      %881 = vmatpush1.msra.mxu0 %v386
      %882 = vmatprep.subr.mxu0 0.0
      %883 = vmatpush1.msra.mxu0 %v387
      %884 = vmatprep.subr.mxu0 0.0
      %885 = vmatpush1.msra.mxu0 %v388
      %886 = vmatprep.subr.mxu0 0.0
      %887 = vmatpush1.msra.mxu0 %v389
      %888 = vmatprep.subr.mxu0 0.0
      %889 = vmatpush1.msra.mxu0 %v390
      %890 = vmatprep.subr.mxu0 0.0
      %891 = vmatpush1.msra.mxu0 %v391
      %892 = vmatprep.subr.mxu0 0.0
      %893 = vmatpush1.msra.mxu0 %v392
      %894 = vmatprep.subr.mxu0 0.0
      %895 = vmatpush1.msra.mxu0 %v393
      %896 = vmatprep.subr.mxu0 0.0
      %897 = vmatpush1.msra.mxu0 %v394
      %898 = vmatprep.subr.mxu0 0.0
      %899 = vmatpush1.msra.mxu0 %v395
      %900 = vmatprep.subr.mxu0 0.0
      %901 = vmatpush1.msra.mxu0 %v396
      %902 = vmatprep.subr.mxu0 0.0
      %903 = vmatpush1.msra.mxu0 %v397
      %904 = vmatprep.subr.mxu0 0.0
      %905 = vmatpush1.msra.mxu0 %v398
      %906 = vmatprep.subr.mxu0 0.0
      %907 = vmatpush1.msra.mxu0 %v399
      %908 = vmatprep.subr.mxu0 0.0
      %909 = vmatpush1.msra.mxu0 %v400
      %910 = vmatprep.subr.mxu0 0.0
      %911 = vmatpush1.msra.mxu0 %v401
      %912 = vmatprep.subr.mxu0 0.0
      %913 = vmatpush1.msra.mxu0 %v402
      %914 = vmatprep.subr.mxu0 0.0
      %915 = vmatpush1.msra.mxu0 %v403
      %916 = vmatprep.subr.mxu0 0.0
      %917 = vmatpush1.msra.mxu0 %v404
      %918 = vmatprep.subr.mxu0 0.0
      %919 = vmatpush1.msra.mxu0 %v405
      %920 = vmatprep.subr.mxu0 0.0
      %921 = vmatpush1.msra.mxu0 %v406
      %922 = vmatprep.subr.mxu0 0.0
      %923 = vmatpush1.msra.mxu0 %v407
      %924 = vmatprep.subr.mxu0 0.0
      %925 = vmatpush1.msra.mxu0 %v408
      %926 = vmatprep.subr.mxu0 0.0
      %927 = vmatpush1.msra.mxu0 %v409
      %928 = vmatprep.subr.mxu0 0.0
      %929 = vmatpush1.msra.mxu0 %v410
      %930 = vmatprep.subr.mxu0 0.0
      %931 = vmatpush1.msra.mxu0 %v411
      %932 = vmatprep.subr.mxu0 0.0
      %933 = vmatpush1.msra.mxu0 %v412
      %934 = vmatprep.subr.mxu0 0.0
      %935 = vmatpush1.msra.mxu0 %v413
      %936 = vmatprep.mubr.f32.mxu0 %v551
      %937 = vmatmul.mubr.f32.gmra.mrb[0].mxu0 %v547
      %v938 = vpop.f32.mrb[0].mxu0
      %v939 = vadd.f32 %v869, %v938
      %v940 = vpop.f32.mrb[0].mxu0
      %941 = vdwg.mxu0
      %942 = vmatprep.subr.mxu0 0.0
      %943 = vmatpush1.msra.mxu0 %v414
      %944 = vmatprep.subr.mxu0 0.0
      %945 = vmatpush1.msra.mxu0 %v415
      %946 = vmatprep.subr.mxu0 0.0
      %947 = vmatpush1.msra.mxu0 %v416
      %948 = vmatprep.subr.mxu0 0.0
      %949 = vmatpush1.msra.mxu0 %v417
      %950 = vmatprep.subr.mxu0 0.0
      %951 = vmatpush1.msra.mxu0 %v418
      %952 = vmatprep.subr.mxu0 0.0
      %953 = vmatpush1.msra.mxu0 %v419
      %954 = vmatprep.subr.mxu0 0.0
      %955 = vmatpush1.msra.mxu0 %v420
      %956 = vmatprep.subr.mxu0 0.0
      %957 = vmatpush1.msra.mxu0 %v421
      %958 = vmatprep.subr.mxu0 0.0
      %959 = vmatpush1.msra.mxu0 %v422
      %960 = vmatprep.subr.mxu0 0.0
      %961 = vmatpush1.msra.mxu0 %v423
      %962 = vmatprep.subr.mxu0 0.0
      %963 = vmatpush1.msra.mxu0 %v424
      %964 = vmatprep.subr.mxu0 0.0
      %965 = vmatpush1.msra.mxu0 %v425
      %966 = vmatprep.subr.mxu0 0.0
      %967 = vmatpush1.msra.mxu0 %v426
      %968 = vmatprep.subr.mxu0 0.0
      %969 = vmatpush1.msra.mxu0 %v427
      %970 = vmatprep.subr.mxu0 0.0
      %971 = vmatpush1.msra.mxu0 %v428
      %972 = vmatprep.subr.mxu0 0.0
      %973 = vmatpush1.msra.mxu0 %v429
      %974 = vmatprep.subr.mxu0 0.0
      %975 = vmatpush1.msra.mxu0 %v430
      %976 = vmatprep.subr.mxu0 0.0
      %977 = vmatpush1.msra.mxu0 %v431
      %978 = vmatprep.subr.mxu0 0.0
      %979 = vmatpush1.msra.mxu0 %v432
      %980 = vmatprep.subr.mxu0 0.0
      %981 = vmatpush1.msra.mxu0 %v433
      %982 = vmatprep.subr.mxu0 0.0
      %983 = vmatpush1.msra.mxu0 %v434
      %984 = vmatprep.subr.mxu0 0.0
      %985 = vmatpush1.msra.mxu0 %v435
      %986 = vmatprep.subr.mxu0 0.0
      %987 = vmatpush1.msra.mxu0 %v436
      %988 = vmatprep.subr.mxu0 0.0
      %989 = vmatpush1.msra.mxu0 %v437
      %990 = vmatprep.subr.mxu0 0.0
      %991 = vmatpush1.msra.mxu0 %v438
      %992 = vmatprep.subr.mxu0 0.0
      %993 = vmatpush1.msra.mxu0 %v439
      %994 = vmatprep.subr.mxu0 0.0
      %995 = vmatpush1.msra.mxu0 %v440
      %996 = vmatprep.subr.mxu0 0.0
      %997 = vmatpush1.msra.mxu0 %v441
      %998 = vmatprep.subr.mxu0 0.0
      %999 = vmatpush1.msra.mxu0 %v442
      %1000 = vmatprep.subr.mxu0 0.0
      %1001 = vmatpush1.msra.mxu0 %v443
      %1002 = vmatprep.subr.mxu0 0.0
      %1003 = vmatpush1.msra.mxu0 %v444
      %1004 = vmatprep.subr.mxu0 0.0
      %1005 = vmatpush1.msra.mxu0 %v445
      %1006 = vmatprep.mubr.f32.mxu0 %v559
      %1007 = vmatmul.mubr.f32.gmra.mrb[0].mxu0 %v555
      %v1008 = vpop.f32.mrb[0].mxu0
      %v1009 = vadd.f32 %v939, %v1008
      %v1010 = vpop.f32.mrb[0].mxu0
      %1011 = vdwg.mxu0
      %1012 = vmatprep.subr.mxu0 0.0
      %1013 = vmatpush1.msra.mxu0 %v446
      %1014 = vmatprep.subr.mxu0 0.0
      %1015 = vmatpush1.msra.mxu0 %v447
      %1016 = vmatprep.subr.mxu0 0.0
      %1017 = vmatpush1.msra.mxu0 %v448
      %1018 = vmatprep.subr.mxu0 0.0
      %1019 = vmatpush1.msra.mxu0 %v449
      %1020 = vmatprep.subr.mxu0 0.0
      %1021 = vmatpush1.msra.mxu0 %v450
      %1022 = vmatprep.subr.mxu0 0.0
      %1023 = vmatpush1.msra.mxu0 %v451
      %1024 = vmatprep.subr.mxu0 0.0
      %1025 = vmatpush1.msra.mxu0 %v452
      %1026 = vmatprep.subr.mxu0 0.0
      %1027 = vmatpush1.msra.mxu0 %v453
      %1028 = vmatprep.subr.mxu0 0.0
      %1029 = vmatpush1.msra.mxu0 %v454
      %1030 = vmatprep.subr.mxu0 0.0
      %1031 = vmatpush1.msra.mxu0 %v455
      %1032 = vmatprep.subr.mxu0 0.0
      %1033 = vmatpush1.msra.mxu0 %v456
      %1034 = vmatprep.subr.mxu0 0.0
      %1035 = vmatpush1.msra.mxu0 %v457
      %1036 = vmatprep.subr.mxu0 0.0
      %1037 = vmatpush1.msra.mxu0 %v458
      %1038 = vmatprep.subr.mxu0 0.0
      %1039 = vmatpush1.msra.mxu0 %v459
      %1040 = vmatprep.subr.mxu0 0.0
      %1041 = vmatpush1.msra.mxu0 %v460
      %1042 = vmatprep.subr.mxu0 0.0
      %1043 = vmatpush1.msra.mxu0 %v461
      %1044 = vmatprep.subr.mxu0 0.0
      %1045 = vmatpush1.msra.mxu0 %v462
      %1046 = vmatprep.subr.mxu0 0.0
      %1047 = vmatpush1.msra.mxu0 %v463
      %1048 = vmatprep.subr.mxu0 0.0
      %1049 = vmatpush1.msra.mxu0 %v464
      %1050 = vmatprep.subr.mxu0 0.0
      %1051 = vmatpush1.msra.mxu0 %v465
      %1052 = vmatprep.subr.mxu0 0.0
      %1053 = vmatpush1.msra.mxu0 %v466
      %1054 = vmatprep.subr.mxu0 0.0
      %1055 = vmatpush1.msra.mxu0 %v467
      %1056 = vmatprep.subr.mxu0 0.0
      %1057 = vmatpush1.msra.mxu0 %v468
      %1058 = vmatprep.subr.mxu0 0.0
      %1059 = vmatpush1.msra.mxu0 %v469
      %1060 = vmatprep.subr.mxu0 0.0
      %1061 = vmatpush1.msra.mxu0 %v470
      %1062 = vmatprep.subr.mxu0 0.0
      %1063 = vmatpush1.msra.mxu0 %v471
      %1064 = vmatprep.subr.mxu0 0.0
      %1065 = vmatpush1.msra.mxu0 %v472
      %1066 = vmatprep.subr.mxu0 0.0
      %1067 = vmatpush1.msra.mxu0 %v473
      %1068 = vmatprep.subr.mxu0 0.0
      %1069 = vmatpush1.msra.mxu0 %v474
      %1070 = vmatprep.subr.mxu0 0.0
      %1071 = vmatpush1.msra.mxu0 %v475
      %1072 = vmatprep.subr.mxu0 0.0
      %1073 = vmatpush1.msra.mxu0 %v476
      %1074 = vmatprep.subr.mxu0 0.0
      %1075 = vmatpush1.msra.mxu0 %v477
      %1076 = vmatprep.mubr.f32.mxu0 %v567
      %1077 = vmatmul.mubr.f32.gmra.mrb[0].mxu0 %v563
      %v1078 = vpop.f32.mrb[0].mxu0
      %v1079 = vadd.f32 %v1009, %v1078
      %v1080 = vpop.f32.mrb[0].mxu0
      %1081 = vdwg.mxu0
      %1082 = vmatprep.subr.mxu0 0.0
      %1083 = vmatpush1.msra.mxu0 %v478
      %1084 = vmatprep.subr.mxu0 0.0
      %1085 = vmatpush1.msra.mxu0 %v479
      %1086 = vmatprep.subr.mxu0 0.0
      %1087 = vmatpush1.msra.mxu0 %v480
      %1088 = vmatprep.subr.mxu0 0.0
      %1089 = vmatpush1.msra.mxu0 %v481
      %1090 = vmatprep.subr.mxu0 0.0
      %1091 = vmatpush1.msra.mxu0 %v482
      %1092 = vmatprep.subr.mxu0 0.0
      %1093 = vmatpush1.msra.mxu0 %v483
      %1094 = vmatprep.subr.mxu0 0.0
      %1095 = vmatpush1.msra.mxu0 %v484
      %1096 = vmatprep.subr.mxu0 0.0
      %1097 = vmatpush1.msra.mxu0 %v485
      %1098 = vmatprep.subr.mxu0 0.0
      %1099 = vmatpush1.msra.mxu0 %v486
      %1100 = vmatprep.subr.mxu0 0.0
      %1101 = vmatpush1.msra.mxu0 %v487
      %1102 = vmatprep.subr.mxu0 0.0
      %1103 = vmatpush1.msra.mxu0 %v488
      %1104 = vmatprep.subr.mxu0 0.0
      %1105 = vmatpush1.msra.mxu0 %v489
      %1106 = vmatprep.subr.mxu0 0.0
      %1107 = vmatpush1.msra.mxu0 %v490
      %1108 = vmatprep.subr.mxu0 0.0
      %1109 = vmatpush1.msra.mxu0 %v491
      %1110 = vmatprep.subr.mxu0 0.0
      %1111 = vmatpush1.msra.mxu0 %v492
      %1112 = vmatprep.subr.mxu0 0.0
      %1113 = vmatpush1.msra.mxu0 %v493
      %1114 = vmatprep.subr.mxu0 0.0
      %1115 = vmatpush1.msra.mxu0 %v494
      %1116 = vmatprep.subr.mxu0 0.0
      %1117 = vmatpush1.msra.mxu0 %v495
      %1118 = vmatprep.subr.mxu0 0.0
      %1119 = vmatpush1.msra.mxu0 %v496
      %1120 = vmatprep.subr.mxu0 0.0
      %1121 = vmatpush1.msra.mxu0 %v497
      %1122 = vmatprep.subr.mxu0 0.0
      %1123 = vmatpush1.msra.mxu0 %v498
      %1124 = vmatprep.subr.mxu0 0.0
      %1125 = vmatpush1.msra.mxu0 %v499
      %1126 = vmatprep.subr.mxu0 0.0
      %1127 = vmatpush1.msra.mxu0 %v500
      %1128 = vmatprep.subr.mxu0 0.0
      %1129 = vmatpush1.msra.mxu0 %v501
      %1130 = vmatprep.subr.mxu0 0.0
      %1131 = vmatpush1.msra.mxu0 %v502
      %1132 = vmatprep.subr.mxu0 0.0
      %1133 = vmatpush1.msra.mxu0 %v503
      %1134 = vmatprep.subr.mxu0 0.0
      %1135 = vmatpush1.msra.mxu0 %v504
      %1136 = vmatprep.subr.mxu0 0.0
      %1137 = vmatpush1.msra.mxu0 %v505
      %1138 = vmatprep.subr.mxu0 0.0
      %1139 = vmatpush1.msra.mxu0 %v506
      %1140 = vmatprep.subr.mxu0 0.0
      %1141 = vmatpush1.msra.mxu0 %v507
      %1142 = vmatprep.subr.mxu0 0.0
      %1143 = vmatpush1.msra.mxu0 %v508
      %1144 = vmatprep.subr.mxu0 0.0
      %1145 = vmatpush1.msra.mxu0 %v509
      %1146 = vmatprep.mubr.f32.mxu0 %v575
      %1147 = vmatmul.mubr.f32.gmra.mrb[0].mxu0 %v571
      %v1148 = vpop.f32.mrb[0].mxu0
      %v1149 = vadd.f32 %v1079, %v1148
      %v1150 = vpop.f32.mrb[0].mxu0
      %1151 = vdwg.mxu0
      %v1152 = vadd.f32 %v251, %v1149
      %vm1153 = vcmask 516096
      %1154 = vst.msk [vmem:[#allocation2] sm:$0x1] %vm1153, %v1152
      // Predicated region
      $region41: #{lung_segmentation_forward.1} parent=35 // pred_check
        %p1155 = pneg %p245
      $region42: #{lung_segmentation_forward.1} parent=35 // pred_check_branch
        %1157 = sbr.rel (%p1155) target = $region44
      $region43: #{lung_segmentation_forward.1} parent=35 // pred_region
        %v1158 = vld [vmem:[#allocation2] sm:$0x1]
        %v1159 = vld [vmem:[%s2] sm:$0xff]
        %v1160 = vld [vmem:[%s2 + $0x8] sm:$0xff]
        %v1161 = vld [vmem:[%s2 + $0x10] sm:$0xff]
        %v1162 = vld [vmem:[%s2 + $0x18] sm:$0xff]
        %v1163 = vld [vmem:[%s2 + $0x20] sm:$0xff]
        %v1164 = vld [vmem:[%s2 + $0x28] sm:$0xff]
        %v1165 = vld [vmem:[%s2 + $0x30] sm:$0xff]
        %v1166 = vld [vmem:[%s2 + $0x38] sm:$0xff]
        %v1167 = vld [vmem:[%s2 + $0x40] sm:$0xff]
        %v1168 = vld [vmem:[%s2 + $0x48] sm:$0xff]
        %v1169 = vld [vmem:[%s2 + $0x50] sm:$0xff]
        %v1170 = vld [vmem:[%s2 + $0x58] sm:$0xff]
        %v1171 = vld [vmem:[%s2 + $0x60] sm:$0xff]
        %v1172 = vld [vmem:[%s2 + $0x68] sm:$0xff]
        %v1173 = vld [vmem:[%s2 + $0x70] sm:$0xff]
        %v1174 = vld [vmem:[%s2 + $0x78] sm:$0xff]
        %vm1175 = vcmask 523264
        %v1177 = vsel %vm1175, %v1158, 0
        %1179 = vmatprep.subr.mxu0 %v1160
        %1180 = vmatpush1.msra.mxu0 %v1159
        %1181 = vmatprep.subr.mxu0 %v1162
        %1182 = vmatpush1.msra.mxu0 %v1161
        %1183 = vmatprep.subr.mxu0 %v1164
        %1184 = vmatpush1.msra.mxu0 %v1163
        %1185 = vmatprep.subr.mxu0 %v1166
        %1186 = vmatpush1.msra.mxu0 %v1165
        %1187 = vmatprep.subr.mxu0 %v1168
        %1188 = vmatpush1.msra.mxu0 %v1167
        %1189 = vmatprep.subr.mxu0 %v1170
        %1190 = vmatpush1.msra.mxu0 %v1169
        %1191 = vmatprep.subr.mxu0 %v1172
        %1192 = vmatpush1.msra.mxu0 %v1171
        %1193 = vmatprep.subr.mxu0 %v1174
        %1194 = vmatpush1.msra.mxu0 %v1173
        %1195 = vmatprep.subr.mxu0 0.0
        %1196 = vmatpush1.msra.mxu0 0.0
        %1197 = vmatprep.subr.mxu0 0.0
        %1198 = vmatpush1.msra.mxu0 0.0
        %1199 = vmatprep.subr.mxu0 0.0
        %1200 = vmatpush1.msra.mxu0 0.0
        %1201 = vmatprep.subr.mxu0 0.0
        %1202 = vmatpush1.msra.mxu0 0.0
        %1203 = vmatprep.subr.mxu0 0.0
        %1204 = vmatpush1.msra.mxu0 0.0
        %1205 = vmatprep.subr.mxu0 0.0
        %1206 = vmatpush1.msra.mxu0 0.0
        %1207 = vmatprep.subr.mxu0 0.0
        %1208 = vmatpush1.msra.mxu0 0.0
        %1209 = vmatprep.subr.mxu0 0.0
        %1210 = vmatpush1.msra.mxu0 0.0
        %1211 = vmatprep.subr.mxu0 0.0
        %1212 = vmatpush1.msra.mxu0 0.0
        %1213 = vmatprep.subr.mxu0 0.0
        %1214 = vmatpush1.msra.mxu0 0.0
        %1215 = vmatprep.subr.mxu0 0.0
        %1216 = vmatpush1.msra.mxu0 0.0
        %1217 = vmatprep.subr.mxu0 0.0
        %1218 = vmatpush1.msra.mxu0 0.0
        %1219 = vmatprep.subr.mxu0 0.0
        %1220 = vmatpush1.msra.mxu0 0.0
        %1221 = vmatprep.subr.mxu0 0.0
        %1222 = vmatpush1.msra.mxu0 0.0
        %1223 = vmatprep.subr.mxu0 0.0
        %1224 = vmatpush1.msra.mxu0 0.0
        %1225 = vmatprep.subr.mxu0 0.0
        %1226 = vmatpush1.msra.mxu0 0.0
        %1227 = vmatprep.subr.mxu0 0.0
        %1228 = vmatpush1.msra.mxu0 0.0
        %1229 = vmatprep.subr.mxu0 0.0
        %1230 = vmatpush1.msra.mxu0 0.0
        %1231 = vmatprep.subr.mxu0 0.0
        %1232 = vmatpush1.msra.mxu0 0.0
        %1233 = vmatprep.subr.mxu0 0.0
        %1234 = vmatpush1.msra.mxu0 0.0
        %1235 = vmatprep.subr.mxu0 0.0
        %1236 = vmatpush1.msra.mxu0 0.0
        %1237 = vmatprep.subr.mxu0 0.0
        %1238 = vmatpush1.msra.mxu0 0.0
        %1239 = vmatprep.subr.mxu0 0.0
        %1240 = vmatpush1.msra.mxu0 0.0
        %1241 = vmatprep.subr.mxu0 0.0
        %1242 = vmatpush1.msra.mxu0 0.0
        %1243 = vmatprep.mubr.f32.mxu0 0.0
        %1244 = vmatmul.mubr.f32.gmra.mrb[0].mxu0 %v1177
        %v1245 = vpop.f32.mrb[0].mxu0
        %v1246 = vadd.f32 0.0, %v1245
        %v1247 = vpop.f32.mrb[0].mxu0
        %v1248 = vadd.f32 0.0, %v1247
        %1249 = vdwg.mxu0
        %v1250 = vld [vmem:[#allocation3] sm:$0x1]
        %v1251 = vsub.f32 0.0, %v1250
        %1253 = vset.pattern.permute.xlu0 0
        %1254 = vperm.xlu0 %1253, %v1251
        %v1255 = vpop.permute.xlu0 %1254
        %v1257 = vlaneseq
        %v1258 = vshrl.u32 %v1257, 7
        %v1259 = vsub.s32 0, %v1258
        %v1260 = vrot.slane %v1255, %v1259
        %vm1261 = vcmp.gt.f32.partialorder %v1246, %v1260
        %vm1262 = vcmp.gt.f32.partialorder %v1248, %v1260
        %v1263 = vsel %vm1261, 1, 0
        %v1264 = vsel %vm1262, 1, 0
        %v1265 = vcvt.s32.f32 %v1263
        %v1266 = vcvt.s32.f32 %v1264
        %v1269 = vcombine.low %v1265, %v1266
        %v1271 = vunpack.c.l.s4 1966171168
        %v1272 = vunpack.c.0.s8 %v1271
        %v1273 = vlaneseq
        %v1274 = vshrl.u32 %v1273, 7
        %v1275 = vsub.s32 %v1272, %v1274
        %v1276 = vrot.slane %v1269, %v1275
        %v1278 = vunpack.c.l.s4 1966171168
        %v1279 = vunpack.c.0.s8 %v1278
        %v1280 = vlaneseq
        %v1281 = vshrl.u32 %v1280, 7
        %v1282 = vsub.s32 %v1279, %v1281
        %v1283 = vrot.slane %v1276, %v1282
        %v1285 = vlaneseq
        %vm1286 = vcmp.ge.s32.totalorder %v1285, 0
        %vm1287 = vcmp.lt.s32.totalorder %v1285, 256
        %vm1288 = vmand %vm1286, %vm1287
        %1289 = vst.msk [vmem:[%s244] sm:$0x3] %vm1288, %v1283
      $region44: #{lung_segmentation_forward.1} parent=35 // pred_fallthru
        _
      %p1290 = scmp.lt.s32.totalorder %s21, 1
      %s1291 = scalar_select %p1290, %s21, 1
      %s1292 = smul.addr %s1291, 2
      %s1293 = scalar_lea.vmem %s4, %s1292
      // Predicated region
      $region45: #{lung_segmentation_forward.1} parent=35 // pred_check
        %p1294 = pneg %p143
      $region46: #{lung_segmentation_forward.1} parent=35 // pred_check_branch
        %1296 = sbr.rel (%p1294) target = $region48
      $region47: #{lung_segmentation_forward.1} parent=35 // pred_region
        _
      $region48: #{lung_segmentation_forward.1} parent=35 // pred_fallthru
        _
    $region36: #{lung_segmentation_forward.1} parent=5 // pred_fallthru
      _
    %p1297 = scmp.le.s32.totalorder 2, %s12
    // Predicated region
    $region49: #{lung_segmentation_forward.1} parent=5 // pred_check
      %p1298 = pneg %p1297
    $region50: #{lung_segmentation_forward.1} parent=5 // pred_check_branch
      %1300 = sbr.rel (%p1298) target = $region52
    $region51: #{lung_segmentation_forward.1} parent=5 // pred_region
      %s1301 = ssub.s32 %s12, 2
      // Predicated region
      $region53: #{lung_segmentation_forward.1} parent=51 // pred_check
        %p1302 = pneg %p149
      $region54: #{lung_segmentation_forward.1} parent=51 // pred_check_branch
        %1304 = sbr.rel (%p1302) target = $region56
      $region55: #{lung_segmentation_forward.1} parent=51 // pred_region
        %p1305 = scmp.lt.s32.totalorder %s23, 1
        %s1306 = scalar_select %p1305, %s23, 1
        %s1307 = smul.addr %s1306, 2
        %s1308 = scalar_lea.vmem %s4, %s1307
      $region56: #{lung_segmentation_forward.1} parent=51 // pred_fallthru
        _
    $region52: #{lung_segmentation_forward.1} parent=5 // pred_fallthru
      _
  $region6: #{lung_segmentation_forward.1} parent=0 // loop_footer
    %s16 = sadd.s32 1, %s12
  $region7: #{lung_segmentation_forward.1} parent=0 // loop_footer_branch
    %11 = sbr.rel target = $region3
  $region8: #{lung_segmentation_forward.1} parent=0 // loop_exit
    _

</llo_original>
